<compile_context>
chip_gen: v5e
topology: v5e:2x2
jax: 0.10.0
libtpu: 0.0.40
codegen_flags: <defaults>
</compile_context>

<pallas_src>
import functools
import math

import jax
import jax.numpy as jnp
from jax.experimental import pallas as pl
from jax.experimental.pallas import tpu as pltpu

INPUT_SIZE = 128
H1 = 64
HIDDEN = 16
OUTPUT_SIZE = 2
HEAD_W = OUTPUT_SIZE + 1          # actor logits + critic value, fused head
PAD = 128                         # lane width of the packed weight / output slabs

# column layout of the single packed (128, 128) weight matrix
W_COL_FC1 = 0                     # cols  0:64
W_COL_FC2 = W_COL_FC1 + H1        # cols 64:80
W_COL_HEAD = W_COL_FC2 + HIDDEN   # cols 80:83

# lane layout of the single packed (B, 128) output slab
COL_PROB = 0      # cols 0:2  softmax probabilities
COL_LOGP = 2      # cols 2:4  log-softmax
COL_V = 4         # col  4    critic value
COL_ENT = 5       # col  5    entropy
COL_SAMPLE = 6    # col  6    multinomial sample (as f32)
COL_ALP = 7       # col  7    log-prob of the sampled action
COL_GREEDY = 8    # col  8    argmax action (as f32)


def _policy_kernel(x_ref, u_ref, w_ref, b_ref, out_ref):
    x = x_ref[...]                                    # (tb, 128) f32
    w = w_ref[...]                                    # (128, 128) packed weights
    b = b_ref[...]                                    # (1, 128)   packed biases

    # fc_encode1 + ReLU
    z = jnp.dot(x, w[:, W_COL_FC1:W_COL_FC1 + H1],
                preferred_element_type=jnp.float32) + b[:, W_COL_FC1:W_COL_FC1 + H1]
    z = jnp.maximum(z, 0.0)                           # (tb, 64)
    # fc_encode2 + ReLU
    z = jnp.dot(z, w[0:H1, W_COL_FC2:W_COL_FC2 + HIDDEN],
                preferred_element_type=jnp.float32) + b[:, W_COL_FC2:W_COL_FC2 + HIDDEN]
    z = jnp.maximum(z, 0.0)                           # (tb, 16)
    # fused actor + critic head: lanes 0:2 logits, lane 2 value
    h = jnp.dot(z, w[0:HIDDEN, W_COL_HEAD:W_COL_HEAD + HEAD_W],
                preferred_element_type=jnp.float32) + b[:, W_COL_HEAD:W_COL_HEAD + HEAD_W]

    logits = h[:, 0:OUTPUT_SIZE]                      # (tb, 2)
    v = h[:, OUTPUT_SIZE:OUTPUT_SIZE + 1]             # (tb, 1)

    # numerically stable softmax / log-softmax over the 2 actions (exact division;
    # approx reciprocal buys nothing in this fixed-overhead regime)
    m = jnp.max(logits, axis=1, keepdims=True)
    shifted = logits - m
    e = jnp.exp(shifted)
    s = jnp.sum(e, axis=1, keepdims=True)
    prob = e / s
    logp = shifted - jnp.log(s)
    ent = -jnp.sum(logp * prob, axis=1, keepdims=True)

    # sampling: inverse-CDF multinomial over 2 classes using externally supplied
    # uniforms (U[0,1)), plus greedy argmax (first max on tie, like torch.max)
    u = u_ref[...]                                    # (tb, 1)
    p0, p1 = prob[:, 0:1], prob[:, 1:2]
    lp0, lp1 = logp[:, 0:1], logp[:, 1:2]
    sample_f = (u >= p0).astype(jnp.float32)          # 0 if u < P(0) else 1
    greedy_f = (p1 > p0).astype(jnp.float32)
    alp = jnp.where(sample_f > 0.5, lp1, lp0)

    # assemble the lane-dense (tb, 128) output slab with a chained select over
    # lane indices, then one unmasked full-tile store (no masked (tb,1) stores)
    tb = x.shape[0]
    lane = jax.lax.broadcasted_iota(jnp.int32, (tb, PAD), 1)
    out = jnp.where(lane == COL_PROB + 0, p0,
          jnp.where(lane == COL_PROB + 1, p1,
          jnp.where(lane == COL_LOGP + 0, lp0,
          jnp.where(lane == COL_LOGP + 1, lp1,
          jnp.where(lane == COL_V, v,
          jnp.where(lane == COL_ENT, ent,
          jnp.where(lane == COL_SAMPLE, sample_f,
          jnp.where(lane == COL_ALP, alp,
          jnp.where(lane == COL_GREEDY, greedy_f, 0.0)))))))))
    out_ref[...] = out


def _round_up(x, m):
    return (x + m - 1) // m * m


def _pick_batch_tile(B):
    """cdiv-friendly batch tile: <=1024 rows/step; >=2 grid steps for B >= 512
    so dimension_semantics=("parallel",) can shard across v7x's two cores."""
    TB = 1024
    tb = min(TB, B)
    if B >= 512:
        tb = min(TB, _round_up(pl.cdiv(B, 2), 8))
    return tb


def policy_forward(x, u, w_packed, b_packed):
    """Fused MLP + heads + sampling kernel; returns a (B, 128) f32 slab."""
    B = x.shape[0]
    tb = _pick_batch_tile(B)
    grid = (pl.cdiv(B, tb),)

    cost = pl.CostEstimate(
        flops=2 * B * (INPUT_SIZE * H1 + H1 * HIDDEN + HIDDEN * HEAD_W),
        transcendentals=3 * B,
        bytes_accessed=4 * (2 * B * PAD + B + PAD * PAD + PAD),
    )
    return pl.pallas_call(
        _policy_kernel,
        out_shape=jax.ShapeDtypeStruct((B, PAD), jnp.float32),
        grid=grid,
        in_specs=[
            pl.BlockSpec((tb, PAD), lambda i: (i, 0)),    # x
            pl.BlockSpec((tb, 1), lambda i: (i, 0)),      # uniforms
            pl.BlockSpec((PAD, PAD), lambda i: (0, 0)),   # packed weights (constant block)
            pl.BlockSpec((1, PAD), lambda i: (0, 0)),     # packed biases  (constant block)
        ],
        out_specs=pl.BlockSpec((tb, PAD), lambda i: (i, 0)),
        compiler_params=pltpu.CompilerParams(dimension_semantics=("parallel",)),
        cost_estimate=cost,
    )(x, u, w_packed, b_packed)


@functools.partial(jax.jit, static_argnames=("training",))
def model_forward(w_packed, b_packed, inputs, key, training=True):
    """Mirrors Model.forward. Returns (action, aux) as device arrays (no host sync)."""
    B = inputs.shape[0]
    u = jax.random.uniform(key, (B, 1), jnp.float32)     # fused into the same jit
    out = policy_forward(inputs, u, w_packed, b_packed)

    prob = out[:, COL_PROB:COL_PROB + OUTPUT_SIZE]
    log_prob = out[:, COL_LOGP:COL_LOGP + OUTPUT_SIZE]
    value = out[:, COL_V:COL_V + 1]
    entropy = out[:, COL_ENT:COL_ENT + 1]
    if training:
        sample_num = out[:, COL_SAMPLE:COL_SAMPLE + 1].astype(jnp.int32)
    else:
        sample_num = out[:, COL_GREEDY:COL_GREEDY + 1].astype(jnp.int32)
    action_log_prob = out[:, COL_ALP:COL_ALP + 1]
    # action_map = {0: 2, 1: 3}  ->  action = sample_num + 2, kept on-device;
    # the PyTorch .item() host sync is left to the caller (outside the hot path).
    action = sample_num + 2
    aux = {
        "prob": prob,
        "log_prob": log_prob,
        "v": value,
        "entropy": entropy,
        "action_log_prob": action_log_prob,
        "sample_num": sample_num,
    }
    return action, aux


def init_params(key):
    """PyTorch nn.Linear default init (U[-1/sqrt(fan_in), +]), packed into one
    (128,128) weight matrix + one (1,128) bias row.  Also returns the raw
    (unpacked) params for the pure-JAX reference."""
    def uinit(k, shape, fan_in):
        bound = 1.0 / math.sqrt(fan_in)
        return jax.random.uniform(k, shape, jnp.float32, -bound, bound)

    ks = jax.random.split(key, 8)
    raw = {
        "w1": uinit(ks[0], (INPUT_SIZE, H1), INPUT_SIZE),
        "b1": uinit(ks[1], (H1,), INPUT_SIZE),
        "w2": uinit(ks[2], (H1, HIDDEN), H1),
        "b2": uinit(ks[3], (HIDDEN,), H1),
        "w3": uinit(ks[4], (HIDDEN, OUTPUT_SIZE), HIDDEN),
        "b3": uinit(ks[5], (OUTPUT_SIZE,), HIDDEN),
        "w4": uinit(ks[6], (HIDDEN, 1), HIDDEN),
        "b4": uinit(ks[7], (1,), HIDDEN),
    }

    w_packed = jnp.zeros((PAD, PAD), jnp.float32)
    w_packed = w_packed.at[:INPUT_SIZE, W_COL_FC1:W_COL_FC1 + H1].set(raw["w1"])
    w_packed = w_packed.at[:H1, W_COL_FC2:W_COL_FC2 + HIDDEN].set(raw["w2"])
    w_packed = w_packed.at[:HIDDEN, W_COL_HEAD:W_COL_HEAD + OUTPUT_SIZE].set(raw["w3"])
    w_packed = w_packed.at[:HIDDEN,
                           W_COL_HEAD + OUTPUT_SIZE:W_COL_HEAD + HEAD_W].set(raw["w4"])

    b_packed = jnp.zeros((1, PAD), jnp.float32)
    b_packed = b_packed.at[0, W_COL_FC1:W_COL_FC1 + H1].set(raw["b1"])
    b_packed = b_packed.at[0, W_COL_FC2:W_COL_FC2 + HIDDEN].set(raw["b2"])
    b_packed = b_packed.at[0, W_COL_HEAD:W_COL_HEAD + OUTPUT_SIZE].set(raw["b3"])
    b_packed = b_packed.at[0, W_COL_HEAD + OUTPUT_SIZE:W_COL_HEAD + HEAD_W].set(raw["b4"])
    return w_packed, b_packed, raw


def _reference_forward(raw, x):
    """Pure-JAX reference of the deterministic part of the forward pass."""
    z = jnp.maximum(x @ raw["w1"] + raw["b1"], 0.0)
    z = jnp.maximum(z @ raw["w2"] + raw["b2"], 0.0)
    logits = z @ raw["w3"] + raw["b3"]
    v = z @ raw["w4"] + raw["b4"]
    logp = jax.nn.log_softmax(logits, axis=1)
    prob = jnp.exp(logp)
    ent = -jnp.sum(logp * prob, axis=1, keepdims=True)
    return prob, logp, v, ent


if __name__ == "__main__":
    key = jax.random.PRNGKey(0)
    pkey, xkey, skey = jax.random.split(key, 3)
    w_packed, b_packed, raw = init_params(pkey)

    # batch=1 (the reference module calls .item()), 128-dim Pong RAM state
    x = jax.random.normal(xkey, (1, INPUT_SIZE), jnp.float32)

    action, aux = model_forward(w_packed, b_packed, x, skey, training=True)
    jax.block_until_ready((action, aux))

    # sanity vs a pure-JAX reference on the unpacked weights
    prob_r, logp_r, v_r, ent_r = _reference_forward(raw, x)
    assert float(jnp.max(jnp.abs(aux["prob"] - prob_r))) < 5e-3
    assert float(jnp.max(jnp.abs(aux["log_prob"] - logp_r))) < 5e-3
    assert float(jnp.max(jnp.abs(aux["v"] - v_r))) < 5e-3
    assert float(jnp.max(jnp.abs(aux["entropy"] - ent_r))) < 5e-3

    psum = float(jnp.sum(aux["prob"]))
    assert abs(psum - 1.0) < 1e-3, psum
    a = int(action[0, 0])                 # single host sync, outside the hot path
    assert a in (2, 3), a
    assert bool(jnp.isfinite(aux["entropy"]).all())
    assert bool(jnp.isfinite(aux["action_log_prob"]).all())

    # eval (argmax) path
    action_eval, _ = model_forward(w_packed, b_packed, x, skey, training=False)
    jax.block_until_ready(action_eval)
    assert int(action_eval[0, 0]) in (2, 3)

    # small batched path (rollout-style) still works and stays row-wise consistent
    xb = jax.random.normal(jax.random.PRNGKey(7), (8, INPUT_SIZE), jnp.float32)
    ab, auxb = model_forward(w_packed, b_packed, xb, skey, training=True)
    jax.block_until_ready((ab, auxb))
    prob_b, _, _, _ = _reference_forward(raw, xb)
    assert float(jnp.max(jnp.abs(auxb["prob"] - prob_b))) < 5e-3
    assert bool(jnp.all((ab == 2) | (ab == 3)))

    print("KERNEL_OK")
</pallas_src>

<mosaic_0001>
module attributes {stable_mosaic.version = 11 : i64} {
  func.func @_policy_kernel(%arg0: i32, %arg1: memref<1x128xf32, #tpu.memory_space<vmem>>, %arg2: memref<1x1xf32, #tpu.memory_space<vmem>>, %arg3: memref<128x128xf32, #tpu.memory_space<vmem>>, %arg4: memref<1x128xf32, #tpu.memory_space<vmem>>, %arg5: memref<1x128xf32, #tpu.memory_space<vmem>>) attributes {dimension_semantics = [#tpu.dimension_semantics<parallel>], iteration_bounds = array<i64: 1>, scalar_prefetch = 0 : i64, scratch_operands = 0 : i64, tpu.core_type = #tpu.core_type<tc>, window_params = [{transform_indices = @transform_0, window_bounds = array<i64: 1, 128>}, {transform_indices = @transform_1, window_bounds = array<i64: 1, 1>}, {pipeline_mode = #tpu.pipeline_mode<synchronous>, transform_indices = @transform_2, window_bounds = array<i64: 128, 128>}, {pipeline_mode = #tpu.pipeline_mode<synchronous>, transform_indices = @transform_3, window_bounds = array<i64: 1, 128>}, {transform_indices = @transform_4, window_bounds = array<i64: 1, 128>}]} {
    %c0 = arith.constant 0 : index
    %c0_0 = arith.constant 0 : index
    %0 = vector.load %arg1[%c0, %c0_0] : memref<1x128xf32, #tpu.memory_space<vmem>>, vector<1x128xf32>
    %c0_1 = arith.constant 0 : index
    %c0_2 = arith.constant 0 : index
    %1 = vector.load %arg3[%c0_1, %c0_2] : memref<128x128xf32, #tpu.memory_space<vmem>>, vector<128x128xf32>
    %c0_3 = arith.constant 0 : index
    %c0_4 = arith.constant 0 : index
    %2 = vector.load %arg4[%c0_3, %c0_4] : memref<1x128xf32, #tpu.memory_space<vmem>>, vector<1x128xf32>
    %3 = vector.extract_strided_slice %1 {offsets = [0, 0], sizes = [128, 64], strides = [1, 1]} : vector<128x128xf32> to vector<128x64xf32>
    %cst = arith.constant dense<0.000000e+00> : vector<1x64xf32>
    %4 = tpu.matmul %0, %3, %cst {dimension_numbers = #tpu.dot_dimension_numbers<[1], [0], [0], [1], [0, 0, 1, 1], [], []>} : vector<1x128xf32>, vector<128x64xf32>, vector<1x64xf32> -> vector<1x64xf32>
    %5 = vector.extract_strided_slice %2 {offsets = [0, 0], sizes = [1, 64], strides = [1, 1]} : vector<1x128xf32> to vector<1x64xf32>
    %6 = arith.addf %4, %5 : vector<1x64xf32>
    %cst_5 = arith.constant 0.000000e+00 : f32
    %7 = vector.broadcast %cst_5 : f32 to vector<1x64xf32>
    %8 = arith.maximumf %6, %7 : vector<1x64xf32>
    %9 = vector.extract_strided_slice %1 {offsets = [0, 64], sizes = [64, 16], strides = [1, 1]} : vector<128x128xf32> to vector<64x16xf32>
    %cst_6 = arith.constant dense<0.000000e+00> : vector<1x16xf32>
    %10 = tpu.matmul %8, %9, %cst_6 {dimension_numbers = #tpu.dot_dimension_numbers<[1], [0], [0], [1], [0, 0, 1, 1], [], []>} : vector<1x64xf32>, vector<64x16xf32>, vector<1x16xf32> -> vector<1x16xf32>
    %11 = vector.extract_strided_slice %2 {offsets = [0, 64], sizes = [1, 16], strides = [1, 1]} : vector<1x128xf32> to vector<1x16xf32>
    %12 = arith.addf %10, %11 : vector<1x16xf32>
    %cst_7 = arith.constant 0.000000e+00 : f32
    %13 = vector.broadcast %cst_7 : f32 to vector<1x16xf32>
    %14 = arith.maximumf %12, %13 : vector<1x16xf32>
    %15 = vector.extract_strided_slice %1 {offsets = [0, 80], sizes = [16, 3], strides = [1, 1]} : vector<128x128xf32> to vector<16x3xf32>
    %cst_8 = arith.constant dense<0.000000e+00> : vector<1x3xf32>
    %16 = tpu.matmul %14, %15, %cst_8 {dimension_numbers = #tpu.dot_dimension_numbers<[1], [0], [0], [1], [0, 0, 1, 1], [], []>} : vector<1x16xf32>, vector<16x3xf32>, vector<1x3xf32> -> vector<1x3xf32>
    %17 = vector.extract_strided_slice %2 {offsets = [0, 80], sizes = [1, 3], strides = [1, 1]} : vector<1x128xf32> to vector<1x3xf32>
    %18 = arith.addf %16, %17 : vector<1x3xf32>
    %19 = vector.extract_strided_slice %18 {offsets = [0, 0], sizes = [1, 2], strides = [1, 1]} : vector<1x3xf32> to vector<1x2xf32>
    %20 = vector.extract_strided_slice %18 {offsets = [0, 2], sizes = [1, 1], strides = [1, 1]} : vector<1x3xf32> to vector<1x1xf32>
    %cst_9 = arith.constant dense<0xFF800000> : vector<1xf32>
    %21 = vector.multi_reduction <maximumf>, %19, %cst_9 [1] : vector<1x2xf32> to vector<1xf32>
    %22 = vector.shape_cast %21 : vector<1xf32> to vector<1x1xf32>
    %23 = vector.broadcast %22 : vector<1x1xf32> to vector<1x2xf32>
    %24 = arith.subf %19, %23 : vector<1x2xf32>
    %25 = math.exp %24 : vector<1x2xf32>
    %cst_10 = arith.constant dense<0.000000e+00> : vector<1xf32>
    %26 = vector.multi_reduction <add>, %25, %cst_10 [1] : vector<1x2xf32> to vector<1xf32>
    %27 = vector.shape_cast %26 : vector<1xf32> to vector<1x1xf32>
    %28 = vector.broadcast %27 : vector<1x1xf32> to vector<1x2xf32>
    %29 = arith.divf %25, %28 : vector<1x2xf32>
    %30 = math.log %27 : vector<1x1xf32>
    %31 = vector.broadcast %30 : vector<1x1xf32> to vector<1x2xf32>
    %32 = arith.subf %24, %31 : vector<1x2xf32>
    %33 = arith.mulf %32, %29 : vector<1x2xf32>
    %cst_11 = arith.constant dense<0.000000e+00> : vector<1xf32>
    %34 = vector.multi_reduction <add>, %33, %cst_11 [1] : vector<1x2xf32> to vector<1xf32>
    %35 = vector.shape_cast %34 : vector<1xf32> to vector<1x1xf32>
    %cst_12 = arith.constant 0.000000e+00 : f32
    %36 = vector.broadcast %cst_12 : f32 to vector<1x1xf32>
    %37 = arith.subf %36, %35 : vector<1x1xf32>
    %c0_13 = arith.constant 0 : index
    %c0_14 = arith.constant 0 : index
    %38 = vector.load %arg2[%c0_13, %c0_14] : memref<1x1xf32, #tpu.memory_space<vmem>>, vector<1x1xf32>
    %39 = vector.extract_strided_slice %29 {offsets = [0, 0], sizes = [1, 1], strides = [1, 1]} : vector<1x2xf32> to vector<1x1xf32>
    %40 = vector.extract_strided_slice %29 {offsets = [0, 1], sizes = [1, 1], strides = [1, 1]} : vector<1x2xf32> to vector<1x1xf32>
    %41 = vector.extract_strided_slice %32 {offsets = [0, 0], sizes = [1, 1], strides = [1, 1]} : vector<1x2xf32> to vector<1x1xf32>
    %42 = vector.extract_strided_slice %32 {offsets = [0, 1], sizes = [1, 1], strides = [1, 1]} : vector<1x2xf32> to vector<1x1xf32>
    %43 = arith.cmpf oge, %38, %39 : vector<1x1xf32>
    %44 = arith.extui %43 : vector<1x1xi1> to vector<1x1xi32>
    %45 = arith.sitofp %44 : vector<1x1xi32> to vector<1x1xf32>
    %46 = arith.cmpf ogt, %40, %39 : vector<1x1xf32>
    %47 = arith.extui %46 : vector<1x1xi1> to vector<1x1xi32>
    %48 = arith.sitofp %47 : vector<1x1xi32> to vector<1x1xf32>
    %cst_15 = arith.constant 5.000000e-01 : f32
    %49 = vector.broadcast %cst_15 : f32 to vector<1x1xf32>
    %50 = arith.cmpf ogt, %45, %49 : vector<1x1xf32>
    %51 = arith.select %50, %42, %41 : vector<1x1xi1>, vector<1x1xf32>
    %52 = tpu.iota {dimensions = array<i32: 1>} : vector<1x128xi32>
    %c0_i32 = arith.constant 0 : i32
    %53 = vector.broadcast %c0_i32 : i32 to vector<1x128xi32>
    %54 = arith.cmpi eq, %52, %53 : vector<1x128xi32>
    %c1_i32 = arith.constant 1 : i32
    %55 = vector.broadcast %c1_i32 : i32 to vector<1x128xi32>
    %56 = arith.cmpi eq, %52, %55 : vector<1x128xi32>
    %c2_i32 = arith.constant 2 : i32
    %57 = vector.broadcast %c2_i32 : i32 to vector<1x128xi32>
    %58 = arith.cmpi eq, %52, %57 : vector<1x128xi32>
    %c3_i32 = arith.constant 3 : i32
    %59 = vector.broadcast %c3_i32 : i32 to vector<1x128xi32>
    %60 = arith.cmpi eq, %52, %59 : vector<1x128xi32>
    %c4_i32 = arith.constant 4 : i32
    %61 = vector.broadcast %c4_i32 : i32 to vector<1x128xi32>
    %62 = arith.cmpi eq, %52, %61 : vector<1x128xi32>
    %c5_i32 = arith.constant 5 : i32
    %63 = vector.broadcast %c5_i32 : i32 to vector<1x128xi32>
    %64 = arith.cmpi eq, %52, %63 : vector<1x128xi32>
    %c6_i32 = arith.constant 6 : i32
    %65 = vector.broadcast %c6_i32 : i32 to vector<1x128xi32>
    %66 = arith.cmpi eq, %52, %65 : vector<1x128xi32>
    %c7_i32 = arith.constant 7 : i32
    %67 = vector.broadcast %c7_i32 : i32 to vector<1x128xi32>
    %68 = arith.cmpi eq, %52, %67 : vector<1x128xi32>
    %c8_i32 = arith.constant 8 : i32
    %69 = vector.broadcast %c8_i32 : i32 to vector<1x128xi32>
    %70 = arith.cmpi eq, %52, %69 : vector<1x128xi32>
    %cst_16 = arith.constant 0.000000e+00 : f32
    %71 = vector.shape_cast %48 : vector<1x1xf32> to vector<1x1xf32>
    %72 = vector.broadcast %71 : vector<1x1xf32> to vector<1x128xf32>
    %73 = vector.broadcast %cst_16 : f32 to vector<1x128xf32>
    %74 = arith.select %70, %72, %73 : vector<1x128xi1>, vector<1x128xf32>
    %75 = vector.shape_cast %51 : vector<1x1xf32> to vector<1x1xf32>
    %76 = vector.broadcast %75 : vector<1x1xf32> to vector<1x128xf32>
    %77 = arith.select %68, %76, %74 : vector<1x128xi1>, vector<1x128xf32>
    %78 = vector.shape_cast %45 : vector<1x1xf32> to vector<1x1xf32>
    %79 = vector.broadcast %78 : vector<1x1xf32> to vector<1x128xf32>
    %80 = arith.select %66, %79, %77 : vector<1x128xi1>, vector<1x128xf32>
    %81 = vector.shape_cast %37 : vector<1x1xf32> to vector<1x1xf32>
    %82 = vector.broadcast %81 : vector<1x1xf32> to vector<1x128xf32>
    %83 = arith.select %64, %82, %80 : vector<1x128xi1>, vector<1x128xf32>
    %84 = vector.shape_cast %20 : vector<1x1xf32> to vector<1x1xf32>
    %85 = vector.broadcast %84 : vector<1x1xf32> to vector<1x128xf32>
    %86 = arith.select %62, %85, %83 : vector<1x128xi1>, vector<1x128xf32>
    %87 = vector.shape_cast %42 : vector<1x1xf32> to vector<1x1xf32>
    %88 = vector.broadcast %87 : vector<1x1xf32> to vector<1x128xf32>
    %89 = arith.select %60, %88, %86 : vector<1x128xi1>, vector<1x128xf32>
    %90 = vector.shape_cast %41 : vector<1x1xf32> to vector<1x1xf32>
    %91 = vector.broadcast %90 : vector<1x1xf32> to vector<1x128xf32>
    %92 = arith.select %58, %91, %89 : vector<1x128xi1>, vector<1x128xf32>
    %93 = vector.shape_cast %40 : vector<1x1xf32> to vector<1x1xf32>
    %94 = vector.broadcast %93 : vector<1x1xf32> to vector<1x128xf32>
    %95 = arith.select %56, %94, %92 : vector<1x128xi1>, vector<1x128xf32>
    %96 = vector.shape_cast %39 : vector<1x1xf32> to vector<1x1xf32>
    %97 = vector.broadcast %96 : vector<1x1xf32> to vector<1x128xf32>
    %98 = arith.select %54, %97, %95 : vector<1x128xi1>, vector<1x128xf32>
    %c0_17 = arith.constant 0 : index
    %c0_18 = arith.constant 0 : index
    %99 = vector.load %arg5[%c0_17, %c0_18] : memref<1x128xf32, #tpu.memory_space<vmem>>, vector<1x128xf32>
    tpu.vector_store %arg5[%c0_17, %c0_18], %98 {strides = array<i32>} : memref<1x128xf32, #tpu.memory_space<vmem>>, vector<1x128xf32>,
    return
  }
  func.func @transform_0(%arg0: i32) -> (i32, i32) {
    %c0_i32 = arith.constant 0 : i32
    %c0_i32_0 = arith.constant 0 : i32
    return %arg0, %c0_i32 : i32, i32
  }
  func.func @transform_1(%arg0: i32) -> (i32, i32) {
    %c0_i32 = arith.constant 0 : i32
    %c0_i32_0 = arith.constant 0 : i32
    return %arg0, %c0_i32 : i32, i32
  }
  func.func @transform_2(%arg0: i32) -> (i32, i32) {
    %c0_i32 = arith.constant 0 : i32
    %c0_i32_0 = arith.constant 0 : i32
    %c0_i32_1 = arith.constant 0 : i32
    return %c0_i32, %c0_i32_0 : i32, i32
  }
  func.func @transform_3(%arg0: i32) -> (i32, i32) {
    %c0_i32 = arith.constant 0 : i32
    %c0_i32_0 = arith.constant 0 : i32
    %c0_i32_1 = arith.constant 0 : i32
    return %c0_i32, %c0_i32_0 : i32, i32
  }
  func.func @transform_4(%arg0: i32) -> (i32, i32) {
    %c0_i32 = arith.constant 0 : i32
    %c0_i32_0 = arith.constant 0 : i32
    return %arg0, %c0_i32 : i32, i32
  }
}

</mosaic_0001>

<llo_original>
// kernel: model_forward.1
$region0: #{model_forward.1}
  #allocation0 [shape = 'u32[]', space=smem, size = 0x4, offset = 0x4, fixed_abs, tag = 'smem constant byte address 0x4 - core index']
  #allocation1 [shape = 'u32[72,128]{1,0:T(1,128)}', space=vmem, size = 0x9000, scoped, tag = 'internal scratch']
  #allocation2 [shape = 'f32[1,1]{1,0:T(1,128)S(1)}', space=vmem, size = 0x200, scoped, tag = 'scoped memory for model_forward.1']
  %s0 = inlined_call_operand.vmem [shape: f32[1,128], index: 0, kind: input, shape index: {}]
  %s1 = inlined_call_operand.<no memory space> [shape: f32[1,1], index: 1, kind: input, shape index: {}]
  %s2 = inlined_call_operand.vmem [shape: f32[128,128], index: 2, kind: input, shape index: {}]
  %s3 = inlined_call_operand.vmem [shape: f32[1,128], index: 3, kind: input, shape index: {}]
  %s4 = inlined_call_operand.vmem [shape: f32[1,128], index: 4, kind: output, shape index: {}]
  %s5 = sld [smem:[#allocation0]]
  $region26: #{model_forward.1} parent=0
    _
  %s7 = ssub.s32 1, %s5
  %s8 = scalar_select 0, %s7, %s5
  %v9 = vstv %s1
  %10 = vst [vmem:[#allocation2] sm:$0x1] %v9
  // Predicated region
  $region2: #{model_forward.1} parent=0 // pred_check
    _
  $region3: #{model_forward.1} parent=0 // pred_check_branch
    %12 = sbr.rel (0) target = $region5
  $region4: #{model_forward.1} parent=0 // pred_region
    _
  $region5: #{model_forward.1} parent=0 // pred_fallthru
    _
  // Predicated region
  $region6: #{model_forward.1} parent=0 // pred_check
    _
  $region7: #{model_forward.1} parent=0 // pred_check_branch
    %14 = sbr.rel (0) target = $region9
  $region8: #{model_forward.1} parent=0 // pred_region
    _
  $region9: #{model_forward.1} parent=0 // pred_fallthru
    _
  // Predicated region
  $region10: #{model_forward.1} parent=0 // pred_check
    _
  $region11: #{model_forward.1} parent=0 // pred_check_branch
    %16 = sbr.rel (0) target = $region13
  $region12: #{model_forward.1} parent=0 // pred_region
    _
  $region13: #{model_forward.1} parent=0 // pred_fallthru
    _
  // Predicated region
  $region14: #{model_forward.1} parent=0 // pred_check
    _
  $region15: #{model_forward.1} parent=0 // pred_check_branch
    %18 = sbr.rel (0) target = $region17
  $region16: #{model_forward.1} parent=0 // pred_region
    _
  $region17: #{model_forward.1} parent=0 // pred_fallthru
    _
  %v19 = vld [vmem:[%s0] sm:$0x1]
  %v20 = vld [vmem:[%s2] sm:$0xff]
  %v21 = vld [vmem:[%s2 + $0x8] sm:$0xff]
  %v22 = vld [vmem:[%s2 + $0x10] sm:$0xff]
  %v23 = vld [vmem:[%s2 + $0x18] sm:$0xff]
  %v24 = vld [vmem:[%s2 + $0x20] sm:$0xff]
  %v25 = vld [vmem:[%s2 + $0x28] sm:$0xff]
  %v26 = vld [vmem:[%s2 + $0x30] sm:$0xff]
  %v27 = vld [vmem:[%s2 + $0x38] sm:$0xff]
  %v28 = vld [vmem:[%s2 + $0x40] sm:$0xff]
  %v29 = vld [vmem:[%s2 + $0x48] sm:$0xff]
  %v30 = vld [vmem:[%s2 + $0x50] sm:$0xff]
  %v31 = vld [vmem:[%s2 + $0x58] sm:$0xff]
  %v32 = vld [vmem:[%s2 + $0x60] sm:$0xff]
  %v33 = vld [vmem:[%s2 + $0x68] sm:$0xff]
  %v34 = vld [vmem:[%s2 + $0x70] sm:$0xff]
  %v35 = vld [vmem:[%s2 + $0x78] sm:$0xff]
  %v36 = vld [vmem:[%s3] sm:$0x1]
  %37 = vmatpush.msra.mxu0 %v35
  %38 = vmatpush.msra.mxu0 %v34
  %39 = vmatpush.msra.mxu0 %v33
  %40 = vmatpush.msra.mxu0 %v32
  %41 = vmatpush.msra.mxu0 %v31
  %42 = vmatpush.msra.mxu0 %v30
  %43 = vmatpush.msra.mxu0 %v29
  %44 = vmatpush.msra.mxu0 %v28
  %45 = vmatpush.msra.mxu0 %v27
  %46 = vmatpush.msra.mxu0 %v26
  %47 = vmatpush.msra.mxu0 %v25
  %48 = vmatpush.msra.mxu0 %v24
  %49 = vmatpush.msra.mxu0 %v23
  %50 = vmatpush.msra.mxu0 %v22
  %51 = vmatpush.msra.mxu0 %v21
  %52 = vmatpush.msra.mxu0 %v20
  %53 = vmatmul.f32.gmra.mxu0 %v19
  %v54 = vpop.f32.mrf.mxu0
  %v55 = vadd.f32 %v36, %v54
  %56 = vdwg.mxu0
  %v57 = vmax.f32 %v55, 0.0
  %66 = vrot.lane.b32.xlu0 %v20, 64
  %v67 = vpop.permute.xlu0 %66
  %68 = vrot.lane.b32.xlu0 %v21, 64
  %v69 = vpop.permute.xlu0 %68
  %70 = vrot.lane.b32.xlu0 %v22, 64
  %v71 = vpop.permute.xlu0 %70
  %72 = vrot.lane.b32.xlu0 %v23, 64
  %v73 = vpop.permute.xlu0 %72
  %74 = vrot.lane.b32.xlu0 %v24, 64
  %v75 = vpop.permute.xlu0 %74
  %76 = vrot.lane.b32.xlu0 %v25, 64
  %v77 = vpop.permute.xlu0 %76
  %78 = vrot.lane.b32.xlu0 %v26, 64
  %v79 = vpop.permute.xlu0 %78
  %80 = vrot.lane.b32.xlu0 %v27, 64
  %v81 = vpop.permute.xlu0 %80
  %v91 = vperm.slane %v36, 0
  %92 = vrot.lane.b32.xlu0 %v91, 64
  %v93 = vpop.permute.xlu0 %92
  %vm95 = vcmask 523264
  %v97 = vsel %vm95, %v57, 0
  %99 = vmatpush.msra.mxu0 0.0
  %100 = vmatpush.msra.mxu0 0.0
  %101 = vmatpush.msra.mxu0 0.0
  %102 = vmatpush.msra.mxu0 0.0
  %103 = vmatpush.msra.mxu0 0.0
  %104 = vmatpush.msra.mxu0 0.0
  %105 = vmatpush.msra.mxu0 0.0
  %106 = vmatpush.msra.mxu0 0.0
  %107 = vmatpush.msra.mxu0 %v81
  %108 = vmatpush.msra.mxu0 %v79
  %109 = vmatpush.msra.mxu0 %v77
  %110 = vmatpush.msra.mxu0 %v75
  %111 = vmatpush.msra.mxu0 %v73
  %112 = vmatpush.msra.mxu0 %v71
  %113 = vmatpush.msra.mxu0 %v69
  %114 = vmatpush.msra.mxu0 %v67
  %115 = vmatmul.f32.gmra.mxu0 %v97
  %v116 = vpop.f32.mrf.mxu0
  %v117 = vadd.f32 %v93, %v116
  %118 = vdwg.mxu0
  %v119 = vmax.f32 %v117, 0.0
  %120 = vrot.lane.b32.xlu0 %v20, 48
  %v121 = vpop.permute.xlu0 %120
  %122 = vrot.lane.b32.xlu0 %v21, 48
  %v123 = vpop.permute.xlu0 %122
  %126 = vrot.lane.b32.xlu0 %v91, 48
  %v127 = vpop.permute.xlu0 %126
  %vm129 = vcmask 130048
  %v131 = vsel %vm129, %v119, 0
  %133 = vmatpush.msra.mxu0 0.0
  %134 = vmatpush.msra.mxu0 0.0
  %135 = vmatpush.msra.mxu0 0.0
  %136 = vmatpush.msra.mxu0 0.0
  %137 = vmatpush.msra.mxu0 0.0
  %138 = vmatpush.msra.mxu0 0.0
  %139 = vmatpush.msra.mxu0 0.0
  %140 = vmatpush.msra.mxu0 0.0
  %141 = vmatpush.msra.mxu0 0.0
  %142 = vmatpush.msra.mxu0 0.0
  %143 = vmatpush.msra.mxu0 0.0
  %144 = vmatpush.msra.mxu0 0.0
  %145 = vmatpush.msra.mxu0 0.0
  %146 = vmatpush.msra.mxu0 0.0
  %147 = vmatpush.msra.mxu0 %v123
  %148 = vmatpush.msra.mxu0 %v121
  %149 = vmatmul.f32.gmra.mxu0 %v131
  %v150 = vpop.f32.mrf.mxu0
  %v151 = vadd.f32 %v127, %v150
  %152 = vdwg.mxu0
  %vm153 = vcmask 8192
  %v154 = vsel %vm153, %v151, -inf
  %155 = vmax.xlane.f32.xlu0 %v154
  %v156 = vpop.xlane.xlu0 %155
  %v157 = vsub.f32 %v151, %v156
  %v158 = vmul.f32 %v157, 1.442695
  %v159 = vpow.pop %v158
  %v160 = vsel %vm153, %v159, 0.0
  %161 = vadd.xlane.f32.xlu0 %v160
  %v162 = vpop.xlane.xlu0 %161
  %v163 = vrcp.pop %v162
  %v164 = vmul.f32 %v162, %v163
  %v165 = vsub.f32 1.0, %v164
  %v166 = vmul.f32 %v163, %v165
  %v167 = vadd.f32 %v163, %v166
  %vm168 = vweird.f32 %v162
  %vm169 = vweird.f32 %v163
  %vm170 = vmor %vm168, %vm169
  %v171 = vsel %vm170, %v163, %v167
  %v172 = vand.u32 2147483647, %v162
  %vm173 = vcmp.eq.f32.partialorder %v172, 8.507059e+37
  %v174 = vand.u32 %v162, 2147483648
  %v175 = vor.u32 1.1754944e-38, %v174
  %v176 = vsel %vm173, %v175, %v171
  %v177 = vmul.f32 %v159, %v176
  %v178 = vlog2.pop %v162
  %v179 = vmul.f32 %v178, 0.6931472
  %v180 = vsub.f32 %v157, %v179
  %v181 = vmul.f32 %v180, %v177
  %v182 = vsel %vm153, %v181, 0.0
  %183 = vadd.xlane.f32.xlu0 %v182
  %v184 = vpop.xlane.xlu0 %183
  %v185 = vsub.f32 0.0, %v184
  %v186 = vld [vmem:[#allocation2] sm:$0x1]
  %vm187 = vcmp.ge.f32.partialorder %v186, %v177
  %v188 = vsel %vm187, 1, 0
  %v189 = vcvt.s32.f32 %v188
  %191 = vrot.lane.b32.xlu0 %v177, 1
  %v192 = vpop.permute.xlu0 %191
  %vm194 = vcmp.gt.f32.partialorder %v177, %v192
  %v195 = vsel %vm194, 1, 0
  %v196 = vcvt.s32.f32 %v195
  %vm197 = vcmp.gt.f32.partialorder %v189, 0.5
  %199 = vrot.lane.b32.xlu0 %v180, 127
  %v200 = vpop.permute.xlu0 %199
  %v202 = vsel %vm197, %v200, %v180
  %v203 = vlaneseq
  %v204 = vand.u32 %v203, 127
  %vm205 = vcmp.eq.s32.totalorder %v204, 0
  %vm206 = vcmp.eq.s32.totalorder %v204, 1
  %vm207 = vcmp.eq.s32.totalorder %v204, 2
  %vm208 = vcmp.eq.s32.totalorder %v204, 3
  %vm209 = vcmp.eq.s32.totalorder %v204, 4
  %vm210 = vcmp.eq.s32.totalorder %v204, 5
  %vm211 = vcmp.eq.s32.totalorder %v204, 6
  %vm212 = vcmp.eq.s32.totalorder %v204, 7
  %vm213 = vcmp.eq.s32.totalorder %v204, 8
  %215 = vset.pattern.permute.xlu0 1
  %216 = vperm.xlu0 %215, %v196
  %v217 = vpop.permute.xlu0 %216
  %v219 = vsel %vm213, %v217, 0.0
  %221 = vset.pattern.permute.xlu0 0
  %222 = vperm.xlu0 %221, %v202
  %v223 = vpop.permute.xlu0 %222
  %v225 = vperm.slane %v223, 0
  %v226 = vsel %vm212, %v225, %v219
  %228 = vset.pattern.permute.xlu0 0
  %229 = vperm.xlu0 %228, %v189
  %v230 = vpop.permute.xlu0 %229
  %v232 = vperm.slane %v230, 0
  %v233 = vsel %vm211, %v232, %v226
  %v234 = vsel %vm210, %v185, %v233
  %236 = vset.pattern.permute.xlu0 2
  %237 = vperm.xlu0 %236, %v151
  %v238 = vpop.permute.xlu0 %237
  %v240 = vsel %vm209, %v238, %v234
  %241 = vset.pattern.permute.xlu0 1
  %242 = vperm.xlu0 %241, %v180
  %v243 = vpop.permute.xlu0 %242
  %v245 = vsel %vm208, %v243, %v240
  %246 = vset.pattern.permute.xlu0 0
  %247 = vperm.xlu0 %246, %v180
  %v248 = vpop.permute.xlu0 %247
  %v250 = vsel %vm207, %v248, %v245
  %251 = vset.pattern.permute.xlu0 1
  %252 = vperm.xlu0 %251, %v177
  %v253 = vpop.permute.xlu0 %252
  %v255 = vsel %vm206, %v253, %v250
  %256 = vset.pattern.permute.xlu0 0
  %257 = vperm.xlu0 %256, %v177
  %v258 = vpop.permute.xlu0 %257
  %v260 = vsel %vm205, %v258, %v255
  %261 = vst [vmem:[%s4] sm:$0x1] %v260
  // Predicated region
  $region18: #{model_forward.1} parent=0 // pred_check
    _
  $region19: #{model_forward.1} parent=0 // pred_check_branch
    %263 = sbr.rel (0) target = $region21
  $region20: #{model_forward.1} parent=0 // pred_region
    _
  $region21: #{model_forward.1} parent=0 // pred_fallthru
    _
  // Predicated region
  $region22: #{model_forward.1} parent=0 // pred_check
    _
  $region23: #{model_forward.1} parent=0 // pred_check_branch
    %265 = sbr.rel (0) target = $region25
  $region24: #{model_forward.1} parent=0 // pred_region
    _
  $region25: #{model_forward.1} parent=0 // pred_fallthru
    _

</llo_original>
